<compile_context>
chip_gen: v6e
topology: v6e:2x2x1
jax: 0.10.0
libtpu: 0.0.40
codegen_flags: <defaults>
</compile_context>

<pallas_src>
import jax
import jax.numpy as jnp
from jax.experimental import pallas as pl
from jax.experimental.pallas import tpu as pltpu

BN_EPS = 1e-5
HID = 44          # logical hidden width of fc2/fc3
HID_PAD = 128     # lane-dense padded hidden width
FC1 = 512         # fc1 output width (already a multiple of 128)
IN_PAD = 128      # lane-dense padded width of the packed [state | action] input


def _bn_relu(h, gamma, beta, inv_b):
    """Training-mode BatchNorm1d + relu, fused.

    Centered two-pass variance (numerically robust), biased (divide by B),
    rsqrt goes to the EUP.  Zero-padded feature columns stay exactly zero
    (mu=var=0, gamma_pad=beta_pad=0).
    """
    mu = jnp.sum(h, axis=0, keepdims=True) * inv_b
    d = h - mu
    var = jnp.sum(d * d, axis=0, keepdims=True) * inv_b
    scale = gamma * jax.lax.rsqrt(var + BN_EPS)
    return jnp.maximum(d * scale + beta, 0.0)


def critic_kernel(x_ref, w1_ref, wslab_ref, vec_ref, q_ref):
    # x_ref: (1, B, IN_PAD) packed [state | action | 0] slab for this grid step.
    x = x_ref[0]
    inv_b = 1.0 / x.shape[0]

    # Static (zero-cost) sub-views of the packed parameter slabs.
    g1, be1 = vec_ref[0:1, :], vec_ref[1:2, :]
    g2, be2 = vec_ref[2:3, :HID_PAD], vec_ref[3:4, :HID_PAD]
    g3, be3 = vec_ref[4:5, :HID_PAD], vec_ref[5:6, :HID_PAD]
    b4 = vec_ref[6:7, :HID_PAD]

    w2 = wslab_ref[0:FC1, :]                              # (512, 128)
    w3a = wslab_ref[FC1:FC1 + HID_PAD, :]                 # (128, 128)
    w3b = wslab_ref[FC1 + HID_PAD:FC1 + 2 * HID_PAD, :]   # (128, 128)
    w4 = wslab_ref[FC1 + 2 * HID_PAD:FC1 + 3 * HID_PAD, :]  # (128, 128)

    # fc1 -> bn1 -> relu  (fc1 bias dropped: cancelled exactly by training-mode BN;
    # w1 rows beyond input_dims are zero, so the action part of x contributes 0).
    h1 = jnp.dot(x, w1_ref[...], preferred_element_type=jnp.float32)
    x1 = _bn_relu(h1, g1, be1, inv_b)

    # fc2 -> bn2 -> relu  (lane-dense 128-wide, columns >= 44 stay zero).
    h2 = jnp.dot(x1, w2, preferred_element_type=jnp.float32)
    x2 = _bn_relu(h2, g2, be2, inv_b)

    # fc3 on concat([x2, action], dim=1) as a split matmul; w3b's rows are placed
    # at the action columns of the input slab, so x can be reused directly
    # (no in-kernel concat, no misaligned action load).
    h3 = (jnp.dot(x2, w3a, preferred_element_type=jnp.float32)
          + jnp.dot(x, w3b, preferred_element_type=jnp.float32))
    x3 = _bn_relu(h3, g3, be3, inv_b)

    # fc4 -> q  (only column 0 of the lane-dense 128-wide output is real).
    q_ref[0] = jnp.dot(x3, w4, preferred_element_type=jnp.float32) + b4


@jax.jit
def critic_forward_many(states, actions, kernel_params):
    """Evaluate the critic on N independent batches in ONE pallas_call.

    states:  (N, B, input_dims)   actions: (N, B, act_dims)
    BN statistics are computed per batch index n, matching N separate PyTorch
    forward() calls in .train() mode.  Weights stay resident in VMEM across the
    grid (constant index_map); the grid axis is 'parallel' (megacore on v7x).
    """
    w1p, wslab, vec = kernel_params
    N, B, in_dims = states.shape
    act_dims = actions.shape[-1]

    # Pack [state | action | 0] into one lane-dense slab (host/XLA side, tiny).
    xs = jnp.zeros((N, B, IN_PAD), jnp.float32)
    xs = xs.at[:, :, :in_dims].set(states)
    xs = xs.at[:, :, in_dims:in_dims + act_dims].set(actions)

    flops = 2 * N * B * (IN_PAD * FC1 + FC1 * HID_PAD + 3 * HID_PAD * HID_PAD)
    bytes_accessed = 4 * (w1p.size + wslab.size + vec.size
                          + xs.size + N * B * HID_PAD)

    q_pad = pl.pallas_call(
        critic_kernel,
        out_shape=jax.ShapeDtypeStruct((N, B, HID_PAD), jnp.float32),
        grid_spec=pltpu.PrefetchScalarGridSpec(
            num_scalar_prefetch=0,
            grid=(N,),
            in_specs=[
                pl.BlockSpec((1, B, IN_PAD), lambda n: (n, 0, 0)),
                pl.BlockSpec((IN_PAD, FC1), lambda n: (0, 0)),              # resident
                pl.BlockSpec((FC1 + 3 * HID_PAD, HID_PAD), lambda n: (0, 0)),  # resident
                pl.BlockSpec((8, FC1), lambda n: (0, 0)),                   # resident
            ],
            out_specs=pl.BlockSpec((1, B, HID_PAD), lambda n: (n, 0, 0)),
        ),
        compiler_params=pltpu.CompilerParams(
            dimension_semantics=("parallel",)),
        cost_estimate=pl.CostEstimate(
            flops=flops,
            transcendentals=N * (FC1 + 2 * HID_PAD),
            bytes_accessed=bytes_accessed),
    )(xs, w1p, wslab, vec)
    return q_pad[:, :, :1]


def critic_forward(state, action, kernel_params):
    """Single critic evaluation: (B, input_dims), (B, act_dims) -> (B, 1)."""
    return critic_forward_many(state[None], action[None], kernel_params)[0]


# ----------------------------------------------------------------------------
# Parameter construction (mirrors the PyTorch module's shapes/init) + packing.
# ----------------------------------------------------------------------------

def init_params(key, input_dims, n_agents, n_actions):
    """Logical parameters in PyTorch-equivalent layout (weights transposed to
    (in_features, out_features), biases/gamma/beta as (1, features))."""
    act_dims = n_actions * n_agents
    dims = [
        (input_dims, FC1),          # fc1
        (FC1, HID),                 # fc2
        (HID + act_dims, HID),      # fc3
        (HID, 1),                   # fc4
    ]
    keys = jax.random.split(key, 8)

    def kaiming_uniform(k, fan_in, fan_out):
        bound = jnp.sqrt(2.0) * jnp.sqrt(3.0 / fan_in)   # gain(relu) * sqrt(3/fan_in)
        return jax.random.uniform(k, (fan_in, fan_out), jnp.float32, -bound, bound)

    def linear_bias(k, fan_in, fan_out):
        bound = 1.0 / jnp.sqrt(fan_in)
        return jax.random.uniform(k, (1, fan_out), jnp.float32, -bound, bound)

    w1 = kaiming_uniform(keys[0], *dims[0])
    b1 = linear_bias(keys[1], *dims[0])
    g1 = jnp.ones((1, FC1), jnp.float32)
    be1 = jnp.zeros((1, FC1), jnp.float32)

    w2 = kaiming_uniform(keys[2], *dims[1])
    b2 = linear_bias(keys[3], *dims[1])
    g2 = jnp.ones((1, HID), jnp.float32)
    be2 = jnp.zeros((1, HID), jnp.float32)

    w3 = kaiming_uniform(keys[4], *dims[2])
    b3 = linear_bias(keys[5], *dims[2])
    g3 = jnp.ones((1, HID), jnp.float32)
    be3 = jnp.zeros((1, HID), jnp.float32)

    fan_in4, fan_out4 = dims[3]
    std4 = jnp.sqrt(2.0 / (fan_in4 + fan_out4))           # xavier normal
    w4 = std4 * jax.random.normal(keys[6], (fan_in4, fan_out4), jnp.float32)
    b4 = linear_bias(keys[7], fan_in4, fan_out4)

    return (w1, b1, g1, be1, w2, b2, g2, be2, w3, b3, g3, be3, w4, b4)


def pack_params(params, input_dims, act_dims):
    """Pad to lane-dense 128-wide blocks, drop the BN-cancelled biases, and pack
    everything into three arrays: w1p (128,512), wslab (896,128), vec (8,512)."""
    (w1, b1, g1, be1, w2, b2, g2, be2, w3, b3, g3, be3, w4, b4) = params
    del b1, b2, b3  # exactly cancelled by training-mode BatchNorm
    assert input_dims + act_dims <= IN_PAD

    # fc1 weight row-padded so the packed [state|action|0] slab drives it directly.
    w1p = jnp.zeros((IN_PAD, FC1), jnp.float32).at[:input_dims, :].set(w1)

    # 128-lane-wide weights, padded and stacked into one (896, 128) slab.
    w2p = jnp.zeros((FC1, HID_PAD), jnp.float32).at[:, :HID].set(w2)
    w3a, w3b = w3[:HID, :], w3[HID:, :]
    w3ap = jnp.zeros((HID_PAD, HID_PAD), jnp.float32).at[:HID, :HID].set(w3a)
    w3bp = jnp.zeros((IN_PAD, HID_PAD), jnp.float32).at[
        input_dims:input_dims + act_dims, :HID].set(w3b)
    w4p = jnp.zeros((HID_PAD, HID_PAD), jnp.float32).at[:HID, :1].set(w4)
    wslab = jnp.concatenate([w2p, w3ap, w3bp, w4p], axis=0)   # (896, 128)

    # All tiny per-feature vectors packed into ONE (8, 512) slab.
    vec = jnp.zeros((8, FC1), jnp.float32)
    vec = vec.at[0, :FC1].set(g1[0]).at[1, :FC1].set(be1[0])
    vec = vec.at[2, :HID].set(g2[0]).at[3, :HID].set(be2[0])
    vec = vec.at[4, :HID].set(g3[0]).at[5, :HID].set(be3[0])
    vec = vec.at[6, :1].set(b4[0])

    # TODO(synk): bf16 (v6e/v7x) / fp8 (v7x) cast of w1p/wslab halves/quarters the
    # weight DMA bytes but breaks the 1e-4 f32 parity check in __main__.
    return (w1p, wslab, vec)


def reference_forward(state, action, params):
    """Exact PyTorch-style reference (includes b1/b2/b3 and training-mode BN)."""
    (w1, b1, g1, be1, w2, b2, g2, be2, w3, b3, g3, be3, w4, b4) = params

    def bn_relu(h, g, be):
        mu = jnp.mean(h, axis=0, keepdims=True)
        var = jnp.mean((h - mu) ** 2, axis=0, keepdims=True)
        return jnp.maximum((h - mu) / jnp.sqrt(var + BN_EPS) * g + be, 0.0)

    x = bn_relu(state @ w1 + b1, g1, be1)
    x = bn_relu(x @ w2 + b2, g2, be2)
    x = bn_relu(jnp.concatenate([x, action], axis=1) @ w3 + b3, g3, be3)
    return x @ w4 + b4


if __name__ == "__main__":
    B = 8
    input_dims = 32
    n_agents = 2
    n_actions = 4
    act_dims = n_agents * n_actions

    key = jax.random.PRNGKey(0)
    k_state, k_action, k_params = jax.random.split(key, 3)

    state = jax.random.normal(k_state, (B, input_dims), jnp.float32)
    action = jax.random.normal(k_action, (B, act_dims), jnp.float32)

    params = init_params(k_params, input_dims, n_agents, n_actions)
    kernel_params = pack_params(params, input_dims, act_dims)

    # Single critic evaluation.
    q = jax.block_until_ready(critic_forward(state, action, kernel_params))
    q_ref = reference_forward(state, action, params)
    assert q.shape == (B, 1), q.shape
    assert jnp.allclose(q, q_ref, atol=1e-4, rtol=1e-4), (q, q_ref)

    # N independent critic evaluations amortized into one pallas_call grid
    # (weights resident in VMEM; 'parallel' grid axis -> both TCs on v7x).
    N = 4
    k_s, k_a = jax.random.split(jax.random.PRNGKey(1))
    states = jax.random.normal(k_s, (N, B, input_dims), jnp.float32)
    actions = jax.random.normal(k_a, (N, B, act_dims), jnp.float32)
    qs = jax.block_until_ready(critic_forward_many(states, actions, kernel_params))
    assert qs.shape == (N, B, 1), qs.shape
    for i in range(N):
        qi_ref = reference_forward(states[i], actions[i], params)
        assert jnp.allclose(qs[i], qi_ref, atol=1e-4, rtol=1e-4), (i, qs[i], qi_ref)

    print("KERNEL_OK")
</pallas_src>

<mosaic_0001>
module attributes {stable_mosaic.version = 11 : i64} {
  func.func @critic_kernel(%arg0: i32, %arg1: memref<1x8x128xf32, #tpu.memory_space<vmem>>, %arg2: memref<128x512xf32, #tpu.memory_space<vmem>>, %arg3: memref<896x128xf32, #tpu.memory_space<vmem>>, %arg4: memref<8x512xf32, #tpu.memory_space<vmem>>, %arg5: memref<1x8x128xf32, #tpu.memory_space<vmem>>) attributes {dimension_semantics = [#tpu.dimension_semantics<parallel>], iteration_bounds = array<i64: 1>, scalar_prefetch = 0 : i64, scratch_operands = 0 : i64, tpu.core_type = #tpu.core_type<tc>, window_params = [{transform_indices = @transform_0, window_bounds = array<i64: 1, 8, 128>}, {pipeline_mode = #tpu.pipeline_mode<synchronous>, transform_indices = @transform_1, window_bounds = array<i64: 128, 512>}, {pipeline_mode = #tpu.pipeline_mode<synchronous>, transform_indices = @transform_2, window_bounds = array<i64: 896, 128>}, {pipeline_mode = #tpu.pipeline_mode<synchronous>, transform_indices = @transform_3, window_bounds = array<i64: 8, 512>}, {transform_indices = @transform_4, window_bounds = array<i64: 1, 8, 128>}]} {
    %c0 = arith.constant 0 : index
    %c0_0 = arith.constant 0 : index
    %c0_1 = arith.constant 0 : index
    %0 = vector.load %arg1[%c0, %c0_0, %c0_1] : memref<1x8x128xf32, #tpu.memory_space<vmem>>, vector<1x8x128xf32>
    %1 = vector.shape_cast %0 : vector<1x8x128xf32> to vector<8x128xf32>
    %c0_2 = arith.constant 0 : index
    %c0_3 = arith.constant 0 : index
    %2 = vector.load %arg4[%c0_2, %c0_3] : memref<8x512xf32, #tpu.memory_space<vmem>>, vector<1x512xf32>
    %c1 = arith.constant 1 : index
    %c0_4 = arith.constant 0 : index
    %3 = vector.load %arg4[%c1, %c0_4] : memref<8x512xf32, #tpu.memory_space<vmem>>, vector<1x512xf32>
    %c2 = arith.constant 2 : index
    %c0_5 = arith.constant 0 : index
    %4 = vector.load %arg4[%c2, %c0_5] : memref<8x512xf32, #tpu.memory_space<vmem>>, vector<1x128xf32>
    %c3 = arith.constant 3 : index
    %c0_6 = arith.constant 0 : index
    %5 = vector.load %arg4[%c3, %c0_6] : memref<8x512xf32, #tpu.memory_space<vmem>>, vector<1x128xf32>
    %c4 = arith.constant 4 : index
    %c0_7 = arith.constant 0 : index
    %6 = vector.load %arg4[%c4, %c0_7] : memref<8x512xf32, #tpu.memory_space<vmem>>, vector<1x128xf32>
    %c5 = arith.constant 5 : index
    %c0_8 = arith.constant 0 : index
    %7 = vector.load %arg4[%c5, %c0_8] : memref<8x512xf32, #tpu.memory_space<vmem>>, vector<1x128xf32>
    %c6 = arith.constant 6 : index
    %c0_9 = arith.constant 0 : index
    %8 = vector.load %arg4[%c6, %c0_9] : memref<8x512xf32, #tpu.memory_space<vmem>>, vector<1x128xf32>
    %c0_10 = arith.constant 0 : index
    %c0_11 = arith.constant 0 : index
    %9 = vector.load %arg3[%c0_10, %c0_11] : memref<896x128xf32, #tpu.memory_space<vmem>>, vector<512x128xf32>
    %c512 = arith.constant 512 : index
    %c0_12 = arith.constant 0 : index
    %10 = vector.load %arg3[%c512, %c0_12] : memref<896x128xf32, #tpu.memory_space<vmem>>, vector<128x128xf32>
    %c640 = arith.constant 640 : index
    %c0_13 = arith.constant 0 : index
    %11 = vector.load %arg3[%c640, %c0_13] : memref<896x128xf32, #tpu.memory_space<vmem>>, vector<128x128xf32>
    %c768 = arith.constant 768 : index
    %c0_14 = arith.constant 0 : index
    %12 = vector.load %arg3[%c768, %c0_14] : memref<896x128xf32, #tpu.memory_space<vmem>>, vector<128x128xf32>
    %c0_15 = arith.constant 0 : index
    %c0_16 = arith.constant 0 : index
    %13 = vector.load %arg2[%c0_15, %c0_16] : memref<128x512xf32, #tpu.memory_space<vmem>>, vector<128x512xf32>
    %cst = arith.constant dense<0.000000e+00> : vector<8x512xf32>
    %14 = tpu.matmul %1, %13, %cst {dimension_numbers = #tpu.dot_dimension_numbers<[1], [0], [0], [1], [0, 0, 1, 1], [], []>} : vector<8x128xf32>, vector<128x512xf32>, vector<8x512xf32> -> vector<8x512xf32>
    %cst_17 = arith.constant dense<0.000000e+00> : vector<512xf32>
    %15 = vector.multi_reduction <add>, %14, %cst_17 [0] : vector<8x512xf32> to vector<512xf32>
    %16 = vector.shape_cast %15 : vector<512xf32> to vector<1x512xf32>
    %cst_18 = arith.constant 1.250000e-01 : f32
    %17 = vector.broadcast %cst_18 : f32 to vector<1x512xf32>
    %18 = arith.mulf %16, %17 : vector<1x512xf32>
    %19 = vector.broadcast %18 : vector<1x512xf32> to vector<8x512xf32>
    %20 = arith.subf %14, %19 : vector<8x512xf32>
    %21 = arith.mulf %20, %20 : vector<8x512xf32>
    %cst_19 = arith.constant dense<0.000000e+00> : vector<512xf32>
    %22 = vector.multi_reduction <add>, %21, %cst_19 [0] : vector<8x512xf32> to vector<512xf32>
    %23 = vector.shape_cast %22 : vector<512xf32> to vector<1x512xf32>
    %cst_20 = arith.constant 1.250000e-01 : f32
    %24 = vector.broadcast %cst_20 : f32 to vector<1x512xf32>
    %25 = arith.mulf %23, %24 : vector<1x512xf32>
    %cst_21 = arith.constant 9.99999974E-6 : f32
    %26 = vector.broadcast %cst_21 : f32 to vector<1x512xf32>
    %27 = arith.addf %25, %26 : vector<1x512xf32>
    %28 = math.rsqrt %27 : vector<1x512xf32>
    %29 = arith.mulf %2, %28 : vector<1x512xf32>
    %30 = vector.broadcast %29 : vector<1x512xf32> to vector<8x512xf32>
    %31 = arith.mulf %20, %30 : vector<8x512xf32>
    %32 = vector.broadcast %3 : vector<1x512xf32> to vector<8x512xf32>
    %33 = arith.addf %31, %32 : vector<8x512xf32>
    %cst_22 = arith.constant 0.000000e+00 : f32
    %34 = vector.broadcast %cst_22 : f32 to vector<8x512xf32>
    %35 = arith.maximumf %33, %34 : vector<8x512xf32>
    %cst_23 = arith.constant dense<0.000000e+00> : vector<8x128xf32>
    %36 = tpu.matmul %35, %9, %cst_23 {dimension_numbers = #tpu.dot_dimension_numbers<[1], [0], [0], [1], [0, 0, 1, 1], [], []>} : vector<8x512xf32>, vector<512x128xf32>, vector<8x128xf32> -> vector<8x128xf32>
    %cst_24 = arith.constant dense<0.000000e+00> : vector<128xf32>
    %37 = vector.multi_reduction <add>, %36, %cst_24 [0] : vector<8x128xf32> to vector<128xf32>
    %38 = vector.shape_cast %37 : vector<128xf32> to vector<1x128xf32>
    %cst_25 = arith.constant 1.250000e-01 : f32
    %39 = vector.broadcast %cst_25 : f32 to vector<1x128xf32>
    %40 = arith.mulf %38, %39 : vector<1x128xf32>
    %41 = vector.broadcast %40 : vector<1x128xf32> to vector<8x128xf32>
    %42 = arith.subf %36, %41 : vector<8x128xf32>
    %43 = arith.mulf %42, %42 : vector<8x128xf32>
    %cst_26 = arith.constant dense<0.000000e+00> : vector<128xf32>
    %44 = vector.multi_reduction <add>, %43, %cst_26 [0] : vector<8x128xf32> to vector<128xf32>
    %45 = vector.shape_cast %44 : vector<128xf32> to vector<1x128xf32>
    %cst_27 = arith.constant 1.250000e-01 : f32
    %46 = vector.broadcast %cst_27 : f32 to vector<1x128xf32>
    %47 = arith.mulf %45, %46 : vector<1x128xf32>
    %cst_28 = arith.constant 9.99999974E-6 : f32
    %48 = vector.broadcast %cst_28 : f32 to vector<1x128xf32>
    %49 = arith.addf %47, %48 : vector<1x128xf32>
    %50 = math.rsqrt %49 : vector<1x128xf32>
    %51 = arith.mulf %4, %50 : vector<1x128xf32>
    %52 = vector.broadcast %51 : vector<1x128xf32> to vector<8x128xf32>
    %53 = arith.mulf %42, %52 : vector<8x128xf32>
    %54 = vector.broadcast %5 : vector<1x128xf32> to vector<8x128xf32>
    %55 = arith.addf %53, %54 : vector<8x128xf32>
    %cst_29 = arith.constant 0.000000e+00 : f32
    %56 = vector.broadcast %cst_29 : f32 to vector<8x128xf32>
    %57 = arith.maximumf %55, %56 : vector<8x128xf32>
    %cst_30 = arith.constant dense<0.000000e+00> : vector<8x128xf32>
    %58 = tpu.matmul %57, %10, %cst_30 {dimension_numbers = #tpu.dot_dimension_numbers<[1], [0], [0], [1], [0, 0, 1, 1], [], []>} : vector<8x128xf32>, vector<128x128xf32>, vector<8x128xf32> -> vector<8x128xf32>
    %cst_31 = arith.constant dense<0.000000e+00> : vector<8x128xf32>
    %59 = tpu.matmul %1, %11, %cst_31 {dimension_numbers = #tpu.dot_dimension_numbers<[1], [0], [0], [1], [0, 0, 1, 1], [], []>} : vector<8x128xf32>, vector<128x128xf32>, vector<8x128xf32> -> vector<8x128xf32>
    %60 = arith.addf %58, %59 : vector<8x128xf32>
    %cst_32 = arith.constant dense<0.000000e+00> : vector<128xf32>
    %61 = vector.multi_reduction <add>, %60, %cst_32 [0] : vector<8x128xf32> to vector<128xf32>
    %62 = vector.shape_cast %61 : vector<128xf32> to vector<1x128xf32>
    %cst_33 = arith.constant 1.250000e-01 : f32
    %63 = vector.broadcast %cst_33 : f32 to vector<1x128xf32>
    %64 = arith.mulf %62, %63 : vector<1x128xf32>
    %65 = vector.broadcast %64 : vector<1x128xf32> to vector<8x128xf32>
    %66 = arith.subf %60, %65 : vector<8x128xf32>
    %67 = arith.mulf %66, %66 : vector<8x128xf32>
    %cst_34 = arith.constant dense<0.000000e+00> : vector<128xf32>
    %68 = vector.multi_reduction <add>, %67, %cst_34 [0] : vector<8x128xf32> to vector<128xf32>
    %69 = vector.shape_cast %68 : vector<128xf32> to vector<1x128xf32>
    %cst_35 = arith.constant 1.250000e-01 : f32
    %70 = vector.broadcast %cst_35 : f32 to vector<1x128xf32>
    %71 = arith.mulf %69, %70 : vector<1x128xf32>
    %cst_36 = arith.constant 9.99999974E-6 : f32
    %72 = vector.broadcast %cst_36 : f32 to vector<1x128xf32>
    %73 = arith.addf %71, %72 : vector<1x128xf32>
    %74 = math.rsqrt %73 : vector<1x128xf32>
    %75 = arith.mulf %6, %74 : vector<1x128xf32>
    %76 = vector.broadcast %75 : vector<1x128xf32> to vector<8x128xf32>
    %77 = arith.mulf %66, %76 : vector<8x128xf32>
    %78 = vector.broadcast %7 : vector<1x128xf32> to vector<8x128xf32>
    %79 = arith.addf %77, %78 : vector<8x128xf32>
    %cst_37 = arith.constant 0.000000e+00 : f32
    %80 = vector.broadcast %cst_37 : f32 to vector<8x128xf32>
    %81 = arith.maximumf %79, %80 : vector<8x128xf32>
    %cst_38 = arith.constant dense<0.000000e+00> : vector<8x128xf32>
    %82 = tpu.matmul %81, %12, %cst_38 {dimension_numbers = #tpu.dot_dimension_numbers<[1], [0], [0], [1], [0, 0, 1, 1], [], []>} : vector<8x128xf32>, vector<128x128xf32>, vector<8x128xf32> -> vector<8x128xf32>
    %83 = vector.broadcast %8 : vector<1x128xf32> to vector<8x128xf32>
    %84 = arith.addf %82, %83 : vector<8x128xf32>
    %c0_39 = arith.constant 0 : index
    %c0_40 = arith.constant 0 : index
    %c0_41 = arith.constant 0 : index
    %85 = vector.load %arg5[%c0_39, %c0_40, %c0_41] : memref<1x8x128xf32, #tpu.memory_space<vmem>>, vector<1x8x128xf32>
    %86 = vector.shape_cast %85 : vector<1x8x128xf32> to vector<8x128xf32>
    %87 = vector.shape_cast %84 : vector<8x128xf32> to vector<1x8x128xf32>
    tpu.vector_store %arg5[%c0_39, %c0_40, %c0_41], %87 {strides = array<i32>} : memref<1x8x128xf32, #tpu.memory_space<vmem>>, vector<1x8x128xf32>,
    return
  }
  func.func @transform_0(%arg0: i32) -> (i32, i32, i32) {
    %c0_i32 = arith.constant 0 : i32
    %c0_i32_0 = arith.constant 0 : i32
    %c0_i32_1 = arith.constant 0 : i32
    return %arg0, %c0_i32, %c0_i32_0 : i32, i32, i32
  }
  func.func @transform_1(%arg0: i32) -> (i32, i32) {
    %c0_i32 = arith.constant 0 : i32
    %c0_i32_0 = arith.constant 0 : i32
    %c0_i32_1 = arith.constant 0 : i32
    return %c0_i32, %c0_i32_0 : i32, i32
  }
  func.func @transform_2(%arg0: i32) -> (i32, i32) {
    %c0_i32 = arith.constant 0 : i32
    %c0_i32_0 = arith.constant 0 : i32
    %c0_i32_1 = arith.constant 0 : i32
    return %c0_i32, %c0_i32_0 : i32, i32
  }
  func.func @transform_3(%arg0: i32) -> (i32, i32) {
    %c0_i32 = arith.constant 0 : i32
    %c0_i32_0 = arith.constant 0 : i32
    %c0_i32_1 = arith.constant 0 : i32
    return %c0_i32, %c0_i32_0 : i32, i32
  }
  func.func @transform_4(%arg0: i32) -> (i32, i32, i32) {
    %c0_i32 = arith.constant 0 : i32
    %c0_i32_0 = arith.constant 0 : i32
    %c0_i32_1 = arith.constant 0 : i32
    return %arg0, %c0_i32, %c0_i32_0 : i32, i32, i32
  }
}

</mosaic_0001>

<llo_original>
// kernel: critic_forward_many.1
$region0: #{critic_forward_many.1}
  #allocation0 [shape = 'u32[]', space=smem, size = 0x4, offset = 0x4, fixed_abs, tag = 'smem constant byte address 0x4 - core index']
  #allocation1 [shape = 'u32[144,128]{1,0:T(1,128)}', space=vmem, size = 0x12000, scoped, tag = 'internal scratch']
  %s0 = inlined_call_operand.vmem [shape: f32[1,8,128], index: 0, kind: input, shape index: {}]
  %s1 = inlined_call_operand.hbm [shape: f32[128,512], index: 1, kind: input, shape index: {}]
  %s2 = inlined_call_operand.hbm [shape: f32[896,128], index: 2, kind: input, shape index: {}]
  %s3 = inlined_call_operand.vmem [shape: f32[8,512], index: 3, kind: input, shape index: {}]
  %s4 = inlined_call_operand.vmem [shape: f32[1,8,128], index: 4, kind: output, shape index: {}]
  %s5 = sld [smem:[#allocation0]]
  $region34: #{critic_forward_many.1} parent=0
    _
  %s7 = ssub.s32 1, %s5
  %s8 = scalar_select 0, %s7, %s5
  $region1: #{critic_forward_many.1} parent=0
    #allocation2 [shape = 'u8[262144]{0}', space=vmem, size = 0x40000, scoped, tag = 'input window, operand 1, single buffered']
    #allocation3 [shape = 's32[1]{0}', space=sflag, size = 0x4, scoped, tag = 'scoped memory for critic_forward_many.1']
    #allocation4 [shape = 'u8[458752]{0}', space=vmem, size = 0x70000, scoped, tag = 'input window, operand 2, single buffered']
    #allocation5 [shape = 's32[1]{0}', space=sflag, size = 0x4, scoped, tag = 'scoped memory for critic_forward_many.1']
    %9 = vsyncpa [#allocation3], 0
    %10 = vsyncpa [#allocation5], 0
    // Predicated region
    $region2: #{critic_forward_many.1} parent=1 // pred_check
      _
    $region3: #{critic_forward_many.1} parent=1 // pred_check_branch
      %12 = sbr.rel (0) target = $region5
    $region4: #{critic_forward_many.1} parent=1 // pred_region
      _
    $region5: #{critic_forward_many.1} parent=1 // pred_fallthru
      _
    // Predicated region
    $region6: #{critic_forward_many.1} parent=1 // pred_check
      _
    $region7: #{critic_forward_many.1} parent=1 // pred_check_branch
      %14 = sbr.rel (0) target = $region9
    $region8: #{critic_forward_many.1} parent=1 // pred_region
      %s16 = ssub.s32 8192, 8192
      %17 = vsyncadd [#allocation3], %s16
      %s18 = sshll.u32 [#allocation2], 4
      %s19 = int_to_ptr.vmem [resolvable:$true] %s18
      %24 = dma.hbm_to_vmem [thread:$0]  %s1, 8192, %s19, [#allocation3], 512, 512, 32
    $region9: #{critic_forward_many.1} parent=1 // pred_fallthru
      _
    // Predicated region
    $region10: #{critic_forward_many.1} parent=1 // pred_check
      _
    $region11: #{critic_forward_many.1} parent=1 // pred_check_branch
      %26 = sbr.rel (0) target = $region13
    $region12: #{critic_forward_many.1} parent=1 // pred_region
      %s28 = ssub.s32 14336, 14336
      %29 = vsyncadd [#allocation5], %s28
      %s30 = sshll.u32 [#allocation4], 4
      %s31 = int_to_ptr.vmem [resolvable:$true] %s30
      %36 = dma.hbm_to_vmem [thread:$0]  %s2, 14336, %s31, [#allocation5], 128, 128, 8
    $region13: #{critic_forward_many.1} parent=1 // pred_fallthru
      _
    // Predicated region
    $region14: #{critic_forward_many.1} parent=1 // pred_check
      _
    $region15: #{critic_forward_many.1} parent=1 // pred_check_branch
      %38 = sbr.rel (0) target = $region17
    $region16: #{critic_forward_many.1} parent=1 // pred_region
      _
    $region17: #{critic_forward_many.1} parent=1 // pred_fallthru
      _
    // Predicated region
    $region18: #{critic_forward_many.1} parent=1 // pred_check
      _
    $region19: #{critic_forward_many.1} parent=1 // pred_check_branch
      %40 = sbr.rel (0) target = $region21
    $region20: #{critic_forward_many.1} parent=1 // pred_region
      %41 = dma.done [#allocation3], 8192
    $region21: #{critic_forward_many.1} parent=1 // pred_fallthru
      _
    // Predicated region
    $region22: #{critic_forward_many.1} parent=1 // pred_check
      _
    $region23: #{critic_forward_many.1} parent=1 // pred_check_branch
      %43 = sbr.rel (0) target = $region25
    $region24: #{critic_forward_many.1} parent=1 // pred_region
      %44 = dma.done [#allocation5], 14336
    $region25: #{critic_forward_many.1} parent=1 // pred_fallthru
      _
    %v45 = vld [vmem:[%s0] sm:$0xff]
    %v46 = vld [vmem:[%s3] ss:$8 sm:$0xf]
    %s47 = scalar_lea.vmem %s3, 1
    %v48 = vld [vmem:[%s47] ss:$8 sm:$0xf]
    %v49 = vld [vmem:[%s3 + $0x2] ss:$0 sm:$0xff]
    %v50 = vld [vmem:[%s3 + $0x3] ss:$0 sm:$0xff]
    %v51 = vld [vmem:[%s3 + $0x4] ss:$0 sm:$0xff]
    %v52 = vld [vmem:[%s3 + $0x5] ss:$0 sm:$0xff]
    %v53 = vld [vmem:[%s3 + $0x6] ss:$0 sm:$0xff]
    %v54 = vld [vmem:[#allocation4] sm:$0xff]
    %v55 = vld [vmem:[#allocation4 + $0x8] sm:$0xff]
    %v56 = vld [vmem:[#allocation4 + $0x10] sm:$0xff]
    %v57 = vld [vmem:[#allocation4 + $0x18] sm:$0xff]
    %v58 = vld [vmem:[#allocation4 + $0x20] sm:$0xff]
    %v59 = vld [vmem:[#allocation4 + $0x28] sm:$0xff]
    %v60 = vld [vmem:[#allocation4 + $0x30] sm:$0xff]
    %v61 = vld [vmem:[#allocation4 + $0x38] sm:$0xff]
    %v62 = vld [vmem:[#allocation4 + $0x40] sm:$0xff]
    %v63 = vld [vmem:[#allocation4 + $0x48] sm:$0xff]
    %v64 = vld [vmem:[#allocation4 + $0x50] sm:$0xff]
    %v65 = vld [vmem:[#allocation4 + $0x58] sm:$0xff]
    %v66 = vld [vmem:[#allocation4 + $0x60] sm:$0xff]
    %v67 = vld [vmem:[#allocation4 + $0x68] sm:$0xff]
    %v68 = vld [vmem:[#allocation4 + $0x70] sm:$0xff]
    %v69 = vld [vmem:[#allocation4 + $0x78] sm:$0xff]
    %v70 = vld [vmem:[#allocation4 + $0x80] sm:$0xff]
    %v71 = vld [vmem:[#allocation4 + $0x88] sm:$0xff]
    %v72 = vld [vmem:[#allocation4 + $0x90] sm:$0xff]
    %v73 = vld [vmem:[#allocation4 + $0x98] sm:$0xff]
    %v74 = vld [vmem:[#allocation4 + $0xa0] sm:$0xff]
    %v75 = vld [vmem:[#allocation4 + $0xa8] sm:$0xff]
    %v76 = vld [vmem:[#allocation4 + $0xb0] sm:$0xff]
    %v77 = vld [vmem:[#allocation4 + $0xb8] sm:$0xff]
    %v78 = vld [vmem:[#allocation4 + $0xc0] sm:$0xff]
    %v79 = vld [vmem:[#allocation4 + $0xc8] sm:$0xff]
    %v80 = vld [vmem:[#allocation4 + $0xd0] sm:$0xff]
    %v81 = vld [vmem:[#allocation4 + $0xd8] sm:$0xff]
    %v82 = vld [vmem:[#allocation4 + $0xe0] sm:$0xff]
    %v83 = vld [vmem:[#allocation4 + $0xe8] sm:$0xff]
    %v84 = vld [vmem:[#allocation4 + $0xf0] sm:$0xff]
    %v85 = vld [vmem:[#allocation4 + $0xf8] sm:$0xff]
    %v86 = vld [vmem:[#allocation4 + $0x100] sm:$0xff]
    %v87 = vld [vmem:[#allocation4 + $0x108] sm:$0xff]
    %v88 = vld [vmem:[#allocation4 + $0x110] sm:$0xff]
    %v89 = vld [vmem:[#allocation4 + $0x118] sm:$0xff]
    %v90 = vld [vmem:[#allocation4 + $0x120] sm:$0xff]
    %v91 = vld [vmem:[#allocation4 + $0x128] sm:$0xff]
    %v92 = vld [vmem:[#allocation4 + $0x130] sm:$0xff]
    %v93 = vld [vmem:[#allocation4 + $0x138] sm:$0xff]
    %v94 = vld [vmem:[#allocation4 + $0x140] sm:$0xff]
    %v95 = vld [vmem:[#allocation4 + $0x148] sm:$0xff]
    %v96 = vld [vmem:[#allocation4 + $0x150] sm:$0xff]
    %v97 = vld [vmem:[#allocation4 + $0x158] sm:$0xff]
    %v98 = vld [vmem:[#allocation4 + $0x160] sm:$0xff]
    %v99 = vld [vmem:[#allocation4 + $0x168] sm:$0xff]
    %v100 = vld [vmem:[#allocation4 + $0x170] sm:$0xff]
    %v101 = vld [vmem:[#allocation4 + $0x178] sm:$0xff]
    %v102 = vld [vmem:[#allocation4 + $0x180] sm:$0xff]
    %v103 = vld [vmem:[#allocation4 + $0x188] sm:$0xff]
    %v104 = vld [vmem:[#allocation4 + $0x190] sm:$0xff]
    %v105 = vld [vmem:[#allocation4 + $0x198] sm:$0xff]
    %v106 = vld [vmem:[#allocation4 + $0x1a0] sm:$0xff]
    %v107 = vld [vmem:[#allocation4 + $0x1a8] sm:$0xff]
    %v108 = vld [vmem:[#allocation4 + $0x1b0] sm:$0xff]
    %v109 = vld [vmem:[#allocation4 + $0x1b8] sm:$0xff]
    %v110 = vld [vmem:[#allocation4 + $0x1c0] sm:$0xff]
    %v111 = vld [vmem:[#allocation4 + $0x1c8] sm:$0xff]
    %v112 = vld [vmem:[#allocation4 + $0x1d0] sm:$0xff]
    %v113 = vld [vmem:[#allocation4 + $0x1d8] sm:$0xff]
    %v114 = vld [vmem:[#allocation4 + $0x1e0] sm:$0xff]
    %v115 = vld [vmem:[#allocation4 + $0x1e8] sm:$0xff]
    %v116 = vld [vmem:[#allocation4 + $0x1f0] sm:$0xff]
    %v117 = vld [vmem:[#allocation4 + $0x1f8] sm:$0xff]
    %v118 = vld [vmem:[#allocation4 + $0x200] sm:$0xff]
    %v119 = vld [vmem:[#allocation4 + $0x208] sm:$0xff]
    %v120 = vld [vmem:[#allocation4 + $0x210] sm:$0xff]
    %v121 = vld [vmem:[#allocation4 + $0x218] sm:$0xff]
    %v122 = vld [vmem:[#allocation4 + $0x220] sm:$0xff]
    %v123 = vld [vmem:[#allocation4 + $0x228] sm:$0xff]
    %v124 = vld [vmem:[#allocation4 + $0x230] sm:$0xff]
    %v125 = vld [vmem:[#allocation4 + $0x238] sm:$0xff]
    %v126 = vld [vmem:[#allocation4 + $0x240] sm:$0xff]
    %v127 = vld [vmem:[#allocation4 + $0x248] sm:$0xff]
    %v128 = vld [vmem:[#allocation4 + $0x250] sm:$0xff]
    %v129 = vld [vmem:[#allocation4 + $0x258] sm:$0xff]
    %v130 = vld [vmem:[#allocation4 + $0x260] sm:$0xff]
    %v131 = vld [vmem:[#allocation4 + $0x268] sm:$0xff]
    %v132 = vld [vmem:[#allocation4 + $0x270] sm:$0xff]
    %v133 = vld [vmem:[#allocation4 + $0x278] sm:$0xff]
    %v134 = vld [vmem:[#allocation4 + $0x280] sm:$0xff]
    %v135 = vld [vmem:[#allocation4 + $0x288] sm:$0xff]
    %v136 = vld [vmem:[#allocation4 + $0x290] sm:$0xff]
    %v137 = vld [vmem:[#allocation4 + $0x298] sm:$0xff]
    %v138 = vld [vmem:[#allocation4 + $0x2a0] sm:$0xff]
    %v139 = vld [vmem:[#allocation4 + $0x2a8] sm:$0xff]
    %v140 = vld [vmem:[#allocation4 + $0x2b0] sm:$0xff]
    %v141 = vld [vmem:[#allocation4 + $0x2b8] sm:$0xff]
    %v142 = vld [vmem:[#allocation4 + $0x2c0] sm:$0xff]
    %v143 = vld [vmem:[#allocation4 + $0x2c8] sm:$0xff]
    %v144 = vld [vmem:[#allocation4 + $0x2d0] sm:$0xff]
    %v145 = vld [vmem:[#allocation4 + $0x2d8] sm:$0xff]
    %v146 = vld [vmem:[#allocation4 + $0x2e0] sm:$0xff]
    %v147 = vld [vmem:[#allocation4 + $0x2e8] sm:$0xff]
    %v148 = vld [vmem:[#allocation4 + $0x2f0] sm:$0xff]
    %v149 = vld [vmem:[#allocation4 + $0x2f8] sm:$0xff]
    %v150 = vld [vmem:[#allocation4 + $0x300] sm:$0xff]
    %v151 = vld [vmem:[#allocation4 + $0x308] sm:$0xff]
    %v152 = vld [vmem:[#allocation4 + $0x310] sm:$0xff]
    %v153 = vld [vmem:[#allocation4 + $0x318] sm:$0xff]
    %v154 = vld [vmem:[#allocation4 + $0x320] sm:$0xff]
    %v155 = vld [vmem:[#allocation4 + $0x328] sm:$0xff]
    %v156 = vld [vmem:[#allocation4 + $0x330] sm:$0xff]
    %v157 = vld [vmem:[#allocation4 + $0x338] sm:$0xff]
    %v158 = vld [vmem:[#allocation4 + $0x340] sm:$0xff]
    %v159 = vld [vmem:[#allocation4 + $0x348] sm:$0xff]
    %v160 = vld [vmem:[#allocation4 + $0x350] sm:$0xff]
    %v161 = vld [vmem:[#allocation4 + $0x358] sm:$0xff]
    %v162 = vld [vmem:[#allocation4 + $0x360] sm:$0xff]
    %v163 = vld [vmem:[#allocation4 + $0x368] sm:$0xff]
    %v164 = vld [vmem:[#allocation4 + $0x370] sm:$0xff]
    %v165 = vld [vmem:[#allocation4 + $0x378] sm:$0xff]
    %v166 = vld [vmem:[#allocation2] sm:$0xff]
    %v167 = vld [vmem:[#allocation2 + $0x8] sm:$0xff]
    %v168 = vld [vmem:[#allocation2 + $0x10] sm:$0xff]
    %v169 = vld [vmem:[#allocation2 + $0x18] sm:$0xff]
    %v170 = vld [vmem:[#allocation2 + $0x20] sm:$0xff]
    %v171 = vld [vmem:[#allocation2 + $0x28] sm:$0xff]
    %v172 = vld [vmem:[#allocation2 + $0x30] sm:$0xff]
    %v173 = vld [vmem:[#allocation2 + $0x38] sm:$0xff]
    %v174 = vld [vmem:[#allocation2 + $0x40] sm:$0xff]
    %v175 = vld [vmem:[#allocation2 + $0x48] sm:$0xff]
    %v176 = vld [vmem:[#allocation2 + $0x50] sm:$0xff]
    %v177 = vld [vmem:[#allocation2 + $0x58] sm:$0xff]
    %v178 = vld [vmem:[#allocation2 + $0x60] sm:$0xff]
    %v179 = vld [vmem:[#allocation2 + $0x68] sm:$0xff]
    %v180 = vld [vmem:[#allocation2 + $0x70] sm:$0xff]
    %v181 = vld [vmem:[#allocation2 + $0x78] sm:$0xff]
    %v182 = vld [vmem:[#allocation2 + $0x80] sm:$0xff]
    %v183 = vld [vmem:[#allocation2 + $0x88] sm:$0xff]
    %v184 = vld [vmem:[#allocation2 + $0x90] sm:$0xff]
    %v185 = vld [vmem:[#allocation2 + $0x98] sm:$0xff]
    %v186 = vld [vmem:[#allocation2 + $0xa0] sm:$0xff]
    %v187 = vld [vmem:[#allocation2 + $0xa8] sm:$0xff]
    %v188 = vld [vmem:[#allocation2 + $0xb0] sm:$0xff]
    %v189 = vld [vmem:[#allocation2 + $0xb8] sm:$0xff]
    %v190 = vld [vmem:[#allocation2 + $0xc0] sm:$0xff]
    %v191 = vld [vmem:[#allocation2 + $0xc8] sm:$0xff]
    %v192 = vld [vmem:[#allocation2 + $0xd0] sm:$0xff]
    %v193 = vld [vmem:[#allocation2 + $0xd8] sm:$0xff]
    %v194 = vld [vmem:[#allocation2 + $0xe0] sm:$0xff]
    %v195 = vld [vmem:[#allocation2 + $0xe8] sm:$0xff]
    %v196 = vld [vmem:[#allocation2 + $0xf0] sm:$0xff]
    %v197 = vld [vmem:[#allocation2 + $0xf8] sm:$0xff]
    %v198 = vld [vmem:[#allocation2 + $0x100] sm:$0xff]
    %v199 = vld [vmem:[#allocation2 + $0x108] sm:$0xff]
    %v200 = vld [vmem:[#allocation2 + $0x110] sm:$0xff]
    %v201 = vld [vmem:[#allocation2 + $0x118] sm:$0xff]
    %v202 = vld [vmem:[#allocation2 + $0x120] sm:$0xff]
    %v203 = vld [vmem:[#allocation2 + $0x128] sm:$0xff]
    %v204 = vld [vmem:[#allocation2 + $0x130] sm:$0xff]
    %v205 = vld [vmem:[#allocation2 + $0x138] sm:$0xff]
    %v206 = vld [vmem:[#allocation2 + $0x140] sm:$0xff]
    %v207 = vld [vmem:[#allocation2 + $0x148] sm:$0xff]
    %v208 = vld [vmem:[#allocation2 + $0x150] sm:$0xff]
    %v209 = vld [vmem:[#allocation2 + $0x158] sm:$0xff]
    %v210 = vld [vmem:[#allocation2 + $0x160] sm:$0xff]
    %v211 = vld [vmem:[#allocation2 + $0x168] sm:$0xff]
    %v212 = vld [vmem:[#allocation2 + $0x170] sm:$0xff]
    %v213 = vld [vmem:[#allocation2 + $0x178] sm:$0xff]
    %v214 = vld [vmem:[#allocation2 + $0x180] sm:$0xff]
    %v215 = vld [vmem:[#allocation2 + $0x188] sm:$0xff]
    %v216 = vld [vmem:[#allocation2 + $0x190] sm:$0xff]
    %v217 = vld [vmem:[#allocation2 + $0x198] sm:$0xff]
    %v218 = vld [vmem:[#allocation2 + $0x1a0] sm:$0xff]
    %v219 = vld [vmem:[#allocation2 + $0x1a8] sm:$0xff]
    %v220 = vld [vmem:[#allocation2 + $0x1b0] sm:$0xff]
    %v221 = vld [vmem:[#allocation2 + $0x1b8] sm:$0xff]
    %v222 = vld [vmem:[#allocation2 + $0x1c0] sm:$0xff]
    %v223 = vld [vmem:[#allocation2 + $0x1c8] sm:$0xff]
    %v224 = vld [vmem:[#allocation2 + $0x1d0] sm:$0xff]
    %v225 = vld [vmem:[#allocation2 + $0x1d8] sm:$0xff]
    %v226 = vld [vmem:[#allocation2 + $0x1e0] sm:$0xff]
    %v227 = vld [vmem:[#allocation2 + $0x1e8] sm:$0xff]
    %v228 = vld [vmem:[#allocation2 + $0x1f0] sm:$0xff]
    %v229 = vld [vmem:[#allocation2 + $0x1f8] sm:$0xff]
    %230 = vmatprep.subr.mxu0 %v227
    %231 = vmatpush1.msra.mxu0 %v226
    %232 = vmatprep.subr.mxu0 %v223
    %233 = vmatpush1.msra.mxu0 %v222
    %234 = vmatprep.subr.mxu0 %v219
    %235 = vmatpush1.msra.mxu0 %v218
    %236 = vmatprep.subr.mxu0 %v215
    %237 = vmatpush1.msra.mxu0 %v214
    %238 = vmatprep.subr.mxu0 %v211
    %239 = vmatpush1.msra.mxu0 %v210
    %240 = vmatprep.subr.mxu0 %v207
    %241 = vmatpush1.msra.mxu0 %v206
    %242 = vmatprep.subr.mxu0 %v203
    %243 = vmatpush1.msra.mxu0 %v202
    %244 = vmatprep.subr.mxu0 %v199
    %245 = vmatpush1.msra.mxu0 %v198
    %246 = vmatprep.subr.mxu0 %v195
    %247 = vmatpush1.msra.mxu0 %v194
    %248 = vmatprep.subr.mxu0 %v191
    %249 = vmatpush1.msra.mxu0 %v190
    %250 = vmatprep.subr.mxu0 %v187
    %251 = vmatpush1.msra.mxu0 %v186
    %252 = vmatprep.subr.mxu0 %v183
    %253 = vmatpush1.msra.mxu0 %v182
    %254 = vmatprep.subr.mxu0 %v179
    %255 = vmatpush1.msra.mxu0 %v178
    %256 = vmatprep.subr.mxu0 %v175
    %257 = vmatpush1.msra.mxu0 %v174
    %258 = vmatprep.subr.mxu0 %v171
    %259 = vmatpush1.msra.mxu0 %v170
    %260 = vmatprep.subr.mxu0 %v167
    %261 = vmatpush1.msra.mxu0 %v166
    %262 = vmatprep.subr.mxu0 0.0
    %263 = vmatpush2.msra.mxu0 0.0
    %264 = vmatprep.subr.mxu0 0.0
    %265 = vmatpush2.msra.mxu0 0.0
    %266 = vmatprep.subr.mxu0 0.0
    %267 = vmatpush2.msra.mxu0 0.0
    %268 = vmatprep.subr.mxu0 0.0
    %269 = vmatpush2.msra.mxu0 0.0
    %270 = vmatprep.subr.mxu0 0.0
    %271 = vmatpush2.msra.mxu0 0.0
    %272 = vmatprep.subr.mxu0 0.0
    %273 = vmatpush2.msra.mxu0 0.0
    %274 = vmatprep.subr.mxu0 0.0
    %275 = vmatpush2.msra.mxu0 0.0
    %276 = vmatprep.subr.mxu0 0.0
    %277 = vmatpush2.msra.mxu0 0.0
    %278 = vmatprep.subr.mxu0 0.0
    %279 = vmatpush2.msra.mxu0 0.0
    %280 = vmatprep.subr.mxu0 0.0
    %281 = vmatpush2.msra.mxu0 0.0
    %282 = vmatprep.subr.mxu0 0.0
    %283 = vmatpush2.msra.mxu0 0.0
    %284 = vmatprep.subr.mxu0 0.0
    %285 = vmatpush2.msra.mxu0 0.0
    %286 = vmatprep.subr.mxu0 0.0
    %287 = vmatpush2.msra.mxu0 0.0
    %288 = vmatprep.subr.mxu0 0.0
    %289 = vmatpush2.msra.mxu0 0.0
    %290 = vmatprep.subr.mxu0 0.0
    %291 = vmatpush2.msra.mxu0 0.0
    %292 = vmatprep.subr.mxu0 0.0
    %293 = vmatpush2.msra.mxu0 0.0
    %294 = vmatprep.mubr.f32.mxu0 0.0
    %295 = vmatmul.mubr.f32.gmra.mxu0 %v45
    %v296 = vpop.f32.mrf.mxu0
    %v297 = vadd.f32 0.0, %v296
    %v298 = vpop.f32.mrf.mxu0
    %v299 = vadd.f32 0.0, %v298
    %300 = vdwg.mxu0
    %301 = vmatprep.subr.mxu0 %v229
    %302 = vmatpush1.msra.mxu0 %v228
    %303 = vmatprep.subr.mxu0 %v225
    %304 = vmatpush1.msra.mxu0 %v224
    %305 = vmatprep.subr.mxu0 %v221
    %306 = vmatpush1.msra.mxu0 %v220
    %307 = vmatprep.subr.mxu0 %v217
    %308 = vmatpush1.msra.mxu0 %v216
    %309 = vmatprep.subr.mxu0 %v213
    %310 = vmatpush1.msra.mxu0 %v212
    %311 = vmatprep.subr.mxu0 %v209
    %312 = vmatpush1.msra.mxu0 %v208
    %313 = vmatprep.subr.mxu0 %v205
    %314 = vmatpush1.msra.mxu0 %v204
    %315 = vmatprep.subr.mxu0 %v201
    %316 = vmatpush1.msra.mxu0 %v200
    %317 = vmatprep.subr.mxu0 %v197
    %318 = vmatpush1.msra.mxu0 %v196
    %319 = vmatprep.subr.mxu0 %v193
    %320 = vmatpush1.msra.mxu0 %v192
    %321 = vmatprep.subr.mxu0 %v189
    %322 = vmatpush1.msra.mxu0 %v188
    %323 = vmatprep.subr.mxu0 %v185
    %324 = vmatpush1.msra.mxu0 %v184
    %325 = vmatprep.subr.mxu0 %v181
    %326 = vmatpush1.msra.mxu0 %v180
    %327 = vmatprep.subr.mxu0 %v177
    %328 = vmatpush1.msra.mxu0 %v176
    %329 = vmatprep.subr.mxu0 %v173
    %330 = vmatpush1.msra.mxu0 %v172
    %331 = vmatprep.subr.mxu0 %v169
    %332 = vmatpush1.msra.mxu0 %v168
    %333 = vmatprep.subr.mxu0 0.0
    %334 = vmatpush2.msra.mxu0 0.0
    %335 = vmatprep.subr.mxu0 0.0
    %336 = vmatpush2.msra.mxu0 0.0
    %337 = vmatprep.subr.mxu0 0.0
    %338 = vmatpush2.msra.mxu0 0.0
    %339 = vmatprep.subr.mxu0 0.0
    %340 = vmatpush2.msra.mxu0 0.0
    %341 = vmatprep.subr.mxu0 0.0
    %342 = vmatpush2.msra.mxu0 0.0
    %343 = vmatprep.subr.mxu0 0.0
    %344 = vmatpush2.msra.mxu0 0.0
    %345 = vmatprep.subr.mxu0 0.0
    %346 = vmatpush2.msra.mxu0 0.0
    %347 = vmatprep.subr.mxu0 0.0
    %348 = vmatpush2.msra.mxu0 0.0
    %349 = vmatprep.subr.mxu0 0.0
    %350 = vmatpush2.msra.mxu0 0.0
    %351 = vmatprep.subr.mxu0 0.0
    %352 = vmatpush2.msra.mxu0 0.0
    %353 = vmatprep.subr.mxu0 0.0
    %354 = vmatpush2.msra.mxu0 0.0
    %355 = vmatprep.subr.mxu0 0.0
    %356 = vmatpush2.msra.mxu0 0.0
    %357 = vmatprep.subr.mxu0 0.0
    %358 = vmatpush2.msra.mxu0 0.0
    %359 = vmatprep.subr.mxu0 0.0
    %360 = vmatpush2.msra.mxu0 0.0
    %361 = vmatprep.subr.mxu0 0.0
    %362 = vmatpush2.msra.mxu0 0.0
    %363 = vmatprep.subr.mxu0 0.0
    %364 = vmatpush2.msra.mxu0 0.0
    %365 = vmatprep.mubr.f32.mxu0 0.0
    %366 = vmatmul.mubr.f32.gmra.mxu0 %v45
    %v367 = vpop.f32.mrf.mxu0
    %v368 = vadd.f32 0.0, %v367
    %v369 = vpop.f32.mrf.mxu0
    %v370 = vadd.f32 0.0, %v369
    %371 = vdwg.mxu0
    %v372 = vrot.slane %v297, 4
    %v373 = vadd.f32 %v297, %v372
    %v374 = vrot.slane %v373, 2
    %v375 = vadd.f32 %v373, %v374
    %v376 = vrot.slane %v375, 1
    %v377 = vadd.f32 %v375, %v376
    %v378 = vrot.slane %v299, 4
    %v379 = vadd.f32 %v299, %v378
    %v380 = vrot.slane %v379, 2
    %v381 = vadd.f32 %v379, %v380
    %v382 = vrot.slane %v381, 1
    %v383 = vadd.f32 %v381, %v382
    %v384 = vrot.slane %v368, 4
    %v385 = vadd.f32 %v368, %v384
    %v386 = vrot.slane %v385, 2
    %v387 = vadd.f32 %v385, %v386
    %v388 = vrot.slane %v387, 1
    %v389 = vadd.f32 %v387, %v388
    %v390 = vrot.slane %v370, 4
    %v391 = vadd.f32 %v370, %v390
    %v392 = vrot.slane %v391, 2
    %v393 = vadd.f32 %v391, %v392
    %v394 = vrot.slane %v393, 1
    %v395 = vadd.f32 %v393, %v394
    %v396 = vmul.f32 %v377, 0.125
    %v397 = vmul.f32 %v383, 0.125
    %v398 = vmul.f32 %v389, 0.125
    %v399 = vmul.f32 %v395, 0.125
    %v400 = vsub.f32 %v297, %v396
    %v401 = vsub.f32 %v299, %v397
    %v402 = vsub.f32 %v368, %v398
    %v403 = vsub.f32 %v370, %v399
    %v404 = vmul.f32 %v400, %v400
    %v405 = vmul.f32 %v401, %v401
    %v406 = vmul.f32 %v402, %v402
    %v407 = vmul.f32 %v403, %v403
    %v408 = vrot.slane %v404, 4
    %v409 = vadd.f32 %v404, %v408
    %v410 = vrot.slane %v409, 2
    %v411 = vadd.f32 %v409, %v410
    %v412 = vrot.slane %v411, 1
    %v413 = vadd.f32 %v411, %v412
    %v414 = vrot.slane %v405, 4
    %v415 = vadd.f32 %v405, %v414
    %v416 = vrot.slane %v415, 2
    %v417 = vadd.f32 %v415, %v416
    %v418 = vrot.slane %v417, 1
    %v419 = vadd.f32 %v417, %v418
    %v420 = vrot.slane %v406, 4
    %v421 = vadd.f32 %v406, %v420
    %v422 = vrot.slane %v421, 2
    %v423 = vadd.f32 %v421, %v422
    %v424 = vrot.slane %v423, 1
    %v425 = vadd.f32 %v423, %v424
    %v426 = vrot.slane %v407, 4
    %v427 = vadd.f32 %v407, %v426
    %v428 = vrot.slane %v427, 2
    %v429 = vadd.f32 %v427, %v428
    %v430 = vrot.slane %v429, 1
    %v431 = vadd.f32 %v429, %v430
    %v432 = vmul.f32 %v413, 0.125
    %v433 = vmul.f32 %v419, 0.125
    %v434 = vmul.f32 %v425, 0.125
    %v435 = vmul.f32 %v431, 0.125
    %v436 = vadd.f32 %v432, 1e-05
    %v437 = vadd.f32 %v433, 1e-05
    %v438 = vadd.f32 %v434, 1e-05
    %v439 = vadd.f32 %v435, 1e-05
    %v440 = vrsqrt.pop %v436
    %v441 = vrsqrt.pop %v437
    %v442 = vrsqrt.pop %v438
    %v443 = vrsqrt.pop %v439
    %v448 = vcombine.low %v440, %v441
    %v449 = vcombine.low %v442, %v443
    %v451 = vunpack.c.l.s4 1966171168
    %v452 = vunpack.c.0.s8 %v451
    %v453 = vlaneseq
    %v454 = vshrl.u32 %v453, 7
    %v455 = vsub.s32 %v452, %v454
    %v456 = vrot.slane %v448, %v455
    %v458 = vunpack.c.l.s4 1966171168
    %v459 = vunpack.c.0.s8 %v458
    %v460 = vlaneseq
    %v461 = vshrl.u32 %v460, 7
    %v462 = vsub.s32 %v459, %v461
    %v463 = vrot.slane %v449, %v462
    %v464 = vcombine.low %v456, %v463
    %v466 = vunpack.c.l.s4 1966171168
    %v467 = vunpack.c.0.s8 %v466
    %v468 = vlaneseq
    %v469 = vshrl.u32 %v468, 7
    %v470 = vsub.s32 %v467, %v469
    %v471 = vrot.slane %v464, %v470
    %v473 = vmul.f32 %v46, %v471
    %v475 = vlaneseq
    %v476 = vshrl.u32 %v475, 7
    %v477 = vsub.s32 0, %v476
    %v478 = vrot.slane %v473, %v477
    %v479 = vlaneseq
    %v480 = vshrl.u32 %v479, 7
    %v481 = vsub.s32 1, %v480
    %v482 = vrot.slane %v473, %v481
    %v483 = vlaneseq
    %v484 = vshrl.u32 %v483, 7
    %v485 = vsub.s32 2, %v484
    %v486 = vrot.slane %v473, %v485
    %v487 = vlaneseq
    %v488 = vshrl.u32 %v487, 7
    %v489 = vsub.s32 3, %v488
    %v490 = vrot.slane %v473, %v489
    %v495 = vmul.f32 %v400, %v478
    %v496 = vmul.f32 %v401, %v482
    %v497 = vmul.f32 %v402, %v486
    %v498 = vmul.f32 %v403, %v490
    %v500 = vlaneseq
    %v501 = vshrl.u32 %v500, 7
    %v502 = vsub.s32 0, %v501
    %v503 = vrot.slane %v48, %v502
    %v504 = vlaneseq
    %v505 = vshrl.u32 %v504, 7
    %v506 = vsub.s32 1, %v505
    %v507 = vrot.slane %v48, %v506
    %v508 = vlaneseq
    %v509 = vshrl.u32 %v508, 7
    %v510 = vsub.s32 2, %v509
    %v511 = vrot.slane %v48, %v510
    %v512 = vlaneseq
    %v513 = vshrl.u32 %v512, 7
    %v514 = vsub.s32 3, %v513
    %v515 = vrot.slane %v48, %v514
    %v520 = vadd.f32 %v495, %v503
    %v521 = vadd.f32 %v496, %v507
    %v522 = vadd.f32 %v497, %v511
    %v523 = vadd.f32 %v498, %v515
    %v524 = vmax.f32 %v520, 0.0
    %v525 = vmax.f32 %v521, 0.0
    %v526 = vmax.f32 %v522, 0.0
    %v527 = vmax.f32 %v523, 0.0
    %528 = vmatprep.subr.mxu0 0.0
    %529 = vmatpush1.msra.mxu0 %v69
    %530 = vmatprep.subr.mxu0 0.0
    %531 = vmatpush1.msra.mxu0 %v68
    %532 = vmatprep.subr.mxu0 0.0
    %533 = vmatpush1.msra.mxu0 %v67
    %534 = vmatprep.subr.mxu0 0.0
    %535 = vmatpush1.msra.mxu0 %v66
    %536 = vmatprep.subr.mxu0 0.0
    %537 = vmatpush1.msra.mxu0 %v65
    %538 = vmatprep.subr.mxu0 0.0
    %539 = vmatpush1.msra.mxu0 %v64
    %540 = vmatprep.subr.mxu0 0.0
    %541 = vmatpush1.msra.mxu0 %v63
    %542 = vmatprep.subr.mxu0 0.0
    %543 = vmatpush1.msra.mxu0 %v62
    %544 = vmatprep.subr.mxu0 0.0
    %545 = vmatpush1.msra.mxu0 %v61
    %546 = vmatprep.subr.mxu0 0.0
    %547 = vmatpush1.msra.mxu0 %v60
    %548 = vmatprep.subr.mxu0 0.0
    %549 = vmatpush1.msra.mxu0 %v59
    %550 = vmatprep.subr.mxu0 0.0
    %551 = vmatpush1.msra.mxu0 %v58
    %552 = vmatprep.subr.mxu0 0.0
    %553 = vmatpush1.msra.mxu0 %v57
    %554 = vmatprep.subr.mxu0 0.0
    %555 = vmatpush1.msra.mxu0 %v56
    %556 = vmatprep.subr.mxu0 0.0
    %557 = vmatpush1.msra.mxu0 %v55
    %558 = vmatprep.subr.mxu0 0.0
    %559 = vmatpush1.msra.mxu0 %v54
    %560 = vmatprep.subr.mxu0 0.0
    %561 = vmatpush2.msra.mxu0 %v85
    %562 = vmatprep.subr.mxu0 0.0
    %563 = vmatpush2.msra.mxu0 %v84
    %564 = vmatprep.subr.mxu0 0.0
    %565 = vmatpush2.msra.mxu0 %v83
    %566 = vmatprep.subr.mxu0 0.0
    %567 = vmatpush2.msra.mxu0 %v82
    %568 = vmatprep.subr.mxu0 0.0
    %569 = vmatpush2.msra.mxu0 %v81
    %570 = vmatprep.subr.mxu0 0.0
    %571 = vmatpush2.msra.mxu0 %v80
    %572 = vmatprep.subr.mxu0 0.0
    %573 = vmatpush2.msra.mxu0 %v79
    %574 = vmatprep.subr.mxu0 0.0
    %575 = vmatpush2.msra.mxu0 %v78
    %576 = vmatprep.subr.mxu0 0.0
    %577 = vmatpush2.msra.mxu0 %v77
    %578 = vmatprep.subr.mxu0 0.0
    %579 = vmatpush2.msra.mxu0 %v76
    %580 = vmatprep.subr.mxu0 0.0
    %581 = vmatpush2.msra.mxu0 %v75
    %582 = vmatprep.subr.mxu0 0.0
    %583 = vmatpush2.msra.mxu0 %v74
    %584 = vmatprep.subr.mxu0 0.0
    %585 = vmatpush2.msra.mxu0 %v73
    %586 = vmatprep.subr.mxu0 0.0
    %587 = vmatpush2.msra.mxu0 %v72
    %588 = vmatprep.subr.mxu0 0.0
    %589 = vmatpush2.msra.mxu0 %v71
    %590 = vmatprep.subr.mxu0 0.0
    %591 = vmatpush2.msra.mxu0 %v70
    %592 = vmatprep.mubr.f32.mxu0 %v525
    %593 = vmatmul.mubr.f32.gmra.mxu0 %v524
    %v594 = vpop.f32.mrf.mxu0
    %v595 = vadd.f32 0.0, %v594
    %v596 = vpop.f32.mrf.mxu0
    %597 = vdwg.mxu0
    %598 = vmatprep.subr.mxu0 0.0
    %599 = vmatpush1.msra.mxu0 %v101
    %600 = vmatprep.subr.mxu0 0.0
    %601 = vmatpush1.msra.mxu0 %v100
    %602 = vmatprep.subr.mxu0 0.0
    %603 = vmatpush1.msra.mxu0 %v99
    %604 = vmatprep.subr.mxu0 0.0
    %605 = vmatpush1.msra.mxu0 %v98
    %606 = vmatprep.subr.mxu0 0.0
    %607 = vmatpush1.msra.mxu0 %v97
    %608 = vmatprep.subr.mxu0 0.0
    %609 = vmatpush1.msra.mxu0 %v96
    %610 = vmatprep.subr.mxu0 0.0
    %611 = vmatpush1.msra.mxu0 %v95
    %612 = vmatprep.subr.mxu0 0.0
    %613 = vmatpush1.msra.mxu0 %v94
    %614 = vmatprep.subr.mxu0 0.0
    %615 = vmatpush1.msra.mxu0 %v93
    %616 = vmatprep.subr.mxu0 0.0
    %617 = vmatpush1.msra.mxu0 %v92
    %618 = vmatprep.subr.mxu0 0.0
    %619 = vmatpush1.msra.mxu0 %v91
    %620 = vmatprep.subr.mxu0 0.0
    %621 = vmatpush1.msra.mxu0 %v90
    %622 = vmatprep.subr.mxu0 0.0
    %623 = vmatpush1.msra.mxu0 %v89
    %624 = vmatprep.subr.mxu0 0.0
    %625 = vmatpush1.msra.mxu0 %v88
    %626 = vmatprep.subr.mxu0 0.0
    %627 = vmatpush1.msra.mxu0 %v87
    %628 = vmatprep.subr.mxu0 0.0
    %629 = vmatpush1.msra.mxu0 %v86
    %630 = vmatprep.subr.mxu0 0.0
    %631 = vmatpush2.msra.mxu0 %v117
    %632 = vmatprep.subr.mxu0 0.0
    %633 = vmatpush2.msra.mxu0 %v116
    %634 = vmatprep.subr.mxu0 0.0
    %635 = vmatpush2.msra.mxu0 %v115
    %636 = vmatprep.subr.mxu0 0.0
    %637 = vmatpush2.msra.mxu0 %v114
    %638 = vmatprep.subr.mxu0 0.0
    %639 = vmatpush2.msra.mxu0 %v113
    %640 = vmatprep.subr.mxu0 0.0
    %641 = vmatpush2.msra.mxu0 %v112
    %642 = vmatprep.subr.mxu0 0.0
    %643 = vmatpush2.msra.mxu0 %v111
    %644 = vmatprep.subr.mxu0 0.0
    %645 = vmatpush2.msra.mxu0 %v110
    %646 = vmatprep.subr.mxu0 0.0
    %647 = vmatpush2.msra.mxu0 %v109
    %648 = vmatprep.subr.mxu0 0.0
    %649 = vmatpush2.msra.mxu0 %v108
    %650 = vmatprep.subr.mxu0 0.0
    %651 = vmatpush2.msra.mxu0 %v107
    %652 = vmatprep.subr.mxu0 0.0
    %653 = vmatpush2.msra.mxu0 %v106
    %654 = vmatprep.subr.mxu0 0.0
    %655 = vmatpush2.msra.mxu0 %v105
    %656 = vmatprep.subr.mxu0 0.0
    %657 = vmatpush2.msra.mxu0 %v104
    %658 = vmatprep.subr.mxu0 0.0
    %659 = vmatpush2.msra.mxu0 %v103
    %660 = vmatprep.subr.mxu0 0.0
    %661 = vmatpush2.msra.mxu0 %v102
    %662 = vmatprep.mubr.f32.mxu0 %v527
    %663 = vmatmul.mubr.f32.gmra.mxu0 %v526
    %v664 = vpop.f32.mrf.mxu0
    %v665 = vadd.f32 %v595, %v664
    %v666 = vpop.f32.mrf.mxu0
    %667 = vdwg.mxu0
    %v668 = vrot.slane %v665, 4
    %v669 = vadd.f32 %v665, %v668
    %v670 = vrot.slane %v669, 2
    %v671 = vadd.f32 %v669, %v670
    %v672 = vrot.slane %v671, 1
    %v673 = vadd.f32 %v671, %v672
    %v674 = vmul.f32 %v673, 0.125
    %v675 = vsub.f32 %v665, %v674
    %v676 = vmul.f32 %v675, %v675
    %v677 = vrot.slane %v676, 4
    %v678 = vadd.f32 %v676, %v677
    %v679 = vrot.slane %v678, 2
    %v680 = vadd.f32 %v678, %v679
    %v681 = vrot.slane %v680, 1
    %v682 = vadd.f32 %v680, %v681
    %v683 = vmul.f32 %v682, 0.125
    %v684 = vadd.f32 %v683, 1e-05
    %v685 = vrsqrt.pop %v684
    %v686 = vmul.f32 %v49, %v685
    %v687 = vmul.f32 %v675, %v686
    %v688 = vadd.f32 %v687, %v50
    %v689 = vmax.f32 %v688, 0.0
    %690 = vmatprep.subr.mxu0 0.0
    %691 = vmatpush1.msra.mxu0 %v149
    %692 = vmatprep.subr.mxu0 0.0
    %693 = vmatpush1.msra.mxu0 %v148
    %694 = vmatprep.subr.mxu0 0.0
    %695 = vmatpush1.msra.mxu0 %v147
    %696 = vmatprep.subr.mxu0 0.0
    %697 = vmatpush1.msra.mxu0 %v146
    %698 = vmatprep.subr.mxu0 0.0
    %699 = vmatpush1.msra.mxu0 %v145
    %700 = vmatprep.subr.mxu0 0.0
    %701 = vmatpush1.msra.mxu0 %v144
    %702 = vmatprep.subr.mxu0 0.0
    %703 = vmatpush1.msra.mxu0 %v143
    %704 = vmatprep.subr.mxu0 0.0
    %705 = vmatpush1.msra.mxu0 %v142
    %706 = vmatprep.subr.mxu0 0.0
    %707 = vmatpush1.msra.mxu0 %v141
    %708 = vmatprep.subr.mxu0 0.0
    %709 = vmatpush1.msra.mxu0 %v140
    %710 = vmatprep.subr.mxu0 0.0
    %711 = vmatpush1.msra.mxu0 %v139
    %712 = vmatprep.subr.mxu0 0.0
    %713 = vmatpush1.msra.mxu0 %v138
    %714 = vmatprep.subr.mxu0 0.0
    %715 = vmatpush1.msra.mxu0 %v137
    %716 = vmatprep.subr.mxu0 0.0
    %717 = vmatpush1.msra.mxu0 %v136
    %718 = vmatprep.subr.mxu0 0.0
    %719 = vmatpush1.msra.mxu0 %v135
    %720 = vmatprep.subr.mxu0 0.0
    %721 = vmatpush1.msra.mxu0 %v134
    %722 = vmatprep.subr.mxu0 0.0
    %723 = vmatpush2.msra.mxu0 0.0
    %724 = vmatprep.subr.mxu0 0.0
    %725 = vmatpush2.msra.mxu0 0.0
    %726 = vmatprep.subr.mxu0 0.0
    %727 = vmatpush2.msra.mxu0 0.0
    %728 = vmatprep.subr.mxu0 0.0
    %729 = vmatpush2.msra.mxu0 0.0
    %730 = vmatprep.subr.mxu0 0.0
    %731 = vmatpush2.msra.mxu0 0.0
    %732 = vmatprep.subr.mxu0 0.0
    %733 = vmatpush2.msra.mxu0 0.0
    %734 = vmatprep.subr.mxu0 0.0
    %735 = vmatpush2.msra.mxu0 0.0
    %736 = vmatprep.subr.mxu0 0.0
    %737 = vmatpush2.msra.mxu0 0.0
    %738 = vmatprep.subr.mxu0 0.0
    %739 = vmatpush2.msra.mxu0 0.0
    %740 = vmatprep.subr.mxu0 0.0
    %741 = vmatpush2.msra.mxu0 0.0
    %742 = vmatprep.subr.mxu0 0.0
    %743 = vmatpush2.msra.mxu0 0.0
    %744 = vmatprep.subr.mxu0 0.0
    %745 = vmatpush2.msra.mxu0 0.0
    %746 = vmatprep.subr.mxu0 0.0
    %747 = vmatpush2.msra.mxu0 0.0
    %748 = vmatprep.subr.mxu0 0.0
    %749 = vmatpush2.msra.mxu0 0.0
    %750 = vmatprep.subr.mxu0 0.0
    %751 = vmatpush2.msra.mxu0 0.0
    %752 = vmatprep.subr.mxu0 0.0
    %753 = vmatpush2.msra.mxu0 0.0
    %754 = vmatprep.mubr.f32.mxu0 0.0
    %755 = vmatmul.mubr.f32.gmra.mxu0 %v45
    %v756 = vpop.f32.mrf.mxu0
    %v757 = vadd.f32 0.0, %v756
    %v758 = vpop.f32.mrf.mxu0
    %759 = vdwg.mxu0
    %760 = vmatprep.subr.mxu0 0.0
    %761 = vmatpush1.msra.mxu0 %v133
    %762 = vmatprep.subr.mxu0 0.0
    %763 = vmatpush1.msra.mxu0 %v132
    %764 = vmatprep.subr.mxu0 0.0
    %765 = vmatpush1.msra.mxu0 %v131
    %766 = vmatprep.subr.mxu0 0.0
    %767 = vmatpush1.msra.mxu0 %v130
    %768 = vmatprep.subr.mxu0 0.0
    %769 = vmatpush1.msra.mxu0 %v129
    %770 = vmatprep.subr.mxu0 0.0
    %771 = vmatpush1.msra.mxu0 %v128
    %772 = vmatprep.subr.mxu0 0.0
    %773 = vmatpush1.msra.mxu0 %v127
    %774 = vmatprep.subr.mxu0 0.0
    %775 = vmatpush1.msra.mxu0 %v126
    %776 = vmatprep.subr.mxu0 0.0
    %777 = vmatpush1.msra.mxu0 %v125
    %778 = vmatprep.subr.mxu0 0.0
    %779 = vmatpush1.msra.mxu0 %v124
    %780 = vmatprep.subr.mxu0 0.0
    %781 = vmatpush1.msra.mxu0 %v123
    %782 = vmatprep.subr.mxu0 0.0
    %783 = vmatpush1.msra.mxu0 %v122
    %784 = vmatprep.subr.mxu0 0.0
    %785 = vmatpush1.msra.mxu0 %v121
    %786 = vmatprep.subr.mxu0 0.0
    %787 = vmatpush1.msra.mxu0 %v120
    %788 = vmatprep.subr.mxu0 0.0
    %789 = vmatpush1.msra.mxu0 %v119
    %790 = vmatprep.subr.mxu0 0.0
    %791 = vmatpush1.msra.mxu0 %v118
    %792 = vmatprep.subr.mxu0 0.0
    %793 = vmatpush2.msra.mxu0 0.0
    %794 = vmatprep.subr.mxu0 0.0
    %795 = vmatpush2.msra.mxu0 0.0
    %796 = vmatprep.subr.mxu0 0.0
    %797 = vmatpush2.msra.mxu0 0.0
    %798 = vmatprep.subr.mxu0 0.0
    %799 = vmatpush2.msra.mxu0 0.0
    %800 = vmatprep.subr.mxu0 0.0
    %801 = vmatpush2.msra.mxu0 0.0
    %802 = vmatprep.subr.mxu0 0.0
    %803 = vmatpush2.msra.mxu0 0.0
    %804 = vmatprep.subr.mxu0 0.0
    %805 = vmatpush2.msra.mxu0 0.0
    %806 = vmatprep.subr.mxu0 0.0
    %807 = vmatpush2.msra.mxu0 0.0
    %808 = vmatprep.subr.mxu0 0.0
    %809 = vmatpush2.msra.mxu0 0.0
    %810 = vmatprep.subr.mxu0 0.0
    %811 = vmatpush2.msra.mxu0 0.0
    %812 = vmatprep.subr.mxu0 0.0
    %813 = vmatpush2.msra.mxu0 0.0
    %814 = vmatprep.subr.mxu0 0.0
    %815 = vmatpush2.msra.mxu0 0.0
    %816 = vmatprep.subr.mxu0 0.0
    %817 = vmatpush2.msra.mxu0 0.0
    %818 = vmatprep.subr.mxu0 0.0
    %819 = vmatpush2.msra.mxu0 0.0
    %820 = vmatprep.subr.mxu0 0.0
    %821 = vmatpush2.msra.mxu0 0.0
    %822 = vmatprep.subr.mxu0 0.0
    %823 = vmatpush2.msra.mxu0 0.0
    %824 = vmatprep.mubr.f32.mxu0 0.0
    %825 = vmatmul.mubr.f32.gmra.mxu0 %v689
    %v826 = vpop.f32.mrf.mxu0
    %v827 = vadd.f32 %v757, %v826
    %v828 = vpop.f32.mrf.mxu0
    %829 = vdwg.mxu0
    %v830 = vrot.slane %v827, 4
    %v831 = vadd.f32 %v827, %v830
    %v832 = vrot.slane %v831, 2
    %v833 = vadd.f32 %v831, %v832
    %v834 = vrot.slane %v833, 1
    %v835 = vadd.f32 %v833, %v834
    %v836 = vmul.f32 %v835, 0.125
    %v837 = vsub.f32 %v827, %v836
    %v838 = vmul.f32 %v837, %v837
    %v839 = vrot.slane %v838, 4
    %v840 = vadd.f32 %v838, %v839
    %v841 = vrot.slane %v840, 2
    %v842 = vadd.f32 %v840, %v841
    %v843 = vrot.slane %v842, 1
    %v844 = vadd.f32 %v842, %v843
    %v845 = vmul.f32 %v844, 0.125
    %v846 = vadd.f32 %v845, 1e-05
    %v847 = vrsqrt.pop %v846
    %v848 = vmul.f32 %v51, %v847
    %v849 = vmul.f32 %v837, %v848
    %v850 = vadd.f32 %v849, %v52
    %v851 = vmax.f32 %v850, 0.0
    %852 = vmatprep.subr.mxu0 0.0
    %853 = vmatpush1.msra.mxu0 %v165
    %854 = vmatprep.subr.mxu0 0.0
    %855 = vmatpush1.msra.mxu0 %v164
    %856 = vmatprep.subr.mxu0 0.0
    %857 = vmatpush1.msra.mxu0 %v163
    %858 = vmatprep.subr.mxu0 0.0
    %859 = vmatpush1.msra.mxu0 %v162
    %860 = vmatprep.subr.mxu0 0.0
    %861 = vmatpush1.msra.mxu0 %v161
    %862 = vmatprep.subr.mxu0 0.0
    %863 = vmatpush1.msra.mxu0 %v160
    %864 = vmatprep.subr.mxu0 0.0
    %865 = vmatpush1.msra.mxu0 %v159
    %866 = vmatprep.subr.mxu0 0.0
    %867 = vmatpush1.msra.mxu0 %v158
    %868 = vmatprep.subr.mxu0 0.0
    %869 = vmatpush1.msra.mxu0 %v157
    %870 = vmatprep.subr.mxu0 0.0
    %871 = vmatpush1.msra.mxu0 %v156
    %872 = vmatprep.subr.mxu0 0.0
    %873 = vmatpush1.msra.mxu0 %v155
    %874 = vmatprep.subr.mxu0 0.0
    %875 = vmatpush1.msra.mxu0 %v154
    %876 = vmatprep.subr.mxu0 0.0
    %877 = vmatpush1.msra.mxu0 %v153
    %878 = vmatprep.subr.mxu0 0.0
    %879 = vmatpush1.msra.mxu0 %v152
    %880 = vmatprep.subr.mxu0 0.0
    %881 = vmatpush1.msra.mxu0 %v151
    %882 = vmatprep.subr.mxu0 0.0
    %883 = vmatpush1.msra.mxu0 %v150
    %884 = vmatprep.subr.mxu0 0.0
    %885 = vmatpush2.msra.mxu0 0.0
    %886 = vmatprep.subr.mxu0 0.0
    %887 = vmatpush2.msra.mxu0 0.0
    %888 = vmatprep.subr.mxu0 0.0
    %889 = vmatpush2.msra.mxu0 0.0
    %890 = vmatprep.subr.mxu0 0.0
    %891 = vmatpush2.msra.mxu0 0.0
    %892 = vmatprep.subr.mxu0 0.0
    %893 = vmatpush2.msra.mxu0 0.0
    %894 = vmatprep.subr.mxu0 0.0
    %895 = vmatpush2.msra.mxu0 0.0
    %896 = vmatprep.subr.mxu0 0.0
    %897 = vmatpush2.msra.mxu0 0.0
    %898 = vmatprep.subr.mxu0 0.0
    %899 = vmatpush2.msra.mxu0 0.0
    %900 = vmatprep.subr.mxu0 0.0
    %901 = vmatpush2.msra.mxu0 0.0
    %902 = vmatprep.subr.mxu0 0.0
    %903 = vmatpush2.msra.mxu0 0.0
    %904 = vmatprep.subr.mxu0 0.0
    %905 = vmatpush2.msra.mxu0 0.0
    %906 = vmatprep.subr.mxu0 0.0
    %907 = vmatpush2.msra.mxu0 0.0
    %908 = vmatprep.subr.mxu0 0.0
    %909 = vmatpush2.msra.mxu0 0.0
    %910 = vmatprep.subr.mxu0 0.0
    %911 = vmatpush2.msra.mxu0 0.0
    %912 = vmatprep.subr.mxu0 0.0
    %913 = vmatpush2.msra.mxu0 0.0
    %914 = vmatprep.subr.mxu0 0.0
    %915 = vmatpush2.msra.mxu0 0.0
    %916 = vmatprep.mubr.f32.mxu0 0.0
    %917 = vmatmul.mubr.f32.gmra.mxu0 %v851
    %v918 = vpop.f32.mrf.mxu0
    %v919 = vadd.f32 %v53, %v918
    %v920 = vpop.f32.mrf.mxu0
    %921 = vdwg.mxu0
    %922 = vst [vmem:[%s4] sm:$0xff] %v919
    // Predicated region
    $region26: #{critic_forward_many.1} parent=1 // pred_check
      _
    $region27: #{critic_forward_many.1} parent=1 // pred_check_branch
      %924 = sbr.rel (0) target = $region29
    $region28: #{critic_forward_many.1} parent=1 // pred_region
      _
    $region29: #{critic_forward_many.1} parent=1 // pred_fallthru
      _
    // Predicated region
    $region30: #{critic_forward_many.1} parent=1 // pred_check
      _
    $region31: #{critic_forward_many.1} parent=1 // pred_check_branch
      %926 = sbr.rel (0) target = $region33
    $region32: #{critic_forward_many.1} parent=1 // pred_region
      _
    $region33: #{critic_forward_many.1} parent=1 // pred_fallthru
      _
    %927 = vsyncpa [#allocation3], 1
    %928 = vsyncpa [#allocation5], 1

</llo_original>
